<compile_context>
chip_gen: v7x
topology: tpu7x:2x2x1
jax: 0.10.0
libtpu: 0.0.40
codegen_flags: <defaults>
</compile_context>

<pallas_src>
import functools

import jax
import jax.numpy as jnp
from jax.experimental import pallas as pl
from jax.experimental.pallas import tpu as pltpu


def _round_up(x, m):
    return ((x + m - 1) // m) * m


def _device_config():
    """Per-generation tile / dtype / VMEM defaults."""
    kind = ""
    try:
        kind = jax.devices()[0].device_kind.lower()
    except Exception:
        pass
    is_v7 = ("v7" in kind) or ("tpu7" in kind)
    # v5e / v5p / v4 / older: no bf16 VPU/EUP -> keep elementwise math in f32.
    is_pre_v6 = any(s in kind for s in ("v2", "v3", "v4", "v5"))
    if is_v7:
        # 64 MiB physical VMEM: smaller T tile, raise scoped limit to 48 MiB.
        return dict(tile_t=64, tile_u=32, tile_v=512,
                    compute_dtype=jnp.bfloat16,
                    vmem_limit=48 * 1024 * 1024)
    if is_pre_v6:
        return dict(tile_t=128, tile_u=32, tile_v=512,
                    compute_dtype=jnp.float32,
                    vmem_limit=64 * 1024 * 1024)
    # v6e / unknown
    return dict(tile_t=128, tile_u=32, tile_v=512,
                compute_dtype=jnp.bfloat16,
                vmem_limit=64 * 1024 * 1024)


# --------------------------------------------------------------------------
# Pallas kernel: one (batch, T-tile, U-tile, V-tile) lattice block.
#   enc_h_ref : [1, tT, H]   (already enc@We + b1), bf16
#   dec_h_ref : [1, tU, H]   (already dec@Wd),      bf16
#   w2_ref    : [H, tV]      (MXU dtype)
#   b2_ref    : [1, tV]      (f32)
#   out_ref   : [1, tT, tU, tV]
#   h_ref     : [tT*tU, H]   persistent VMEM scratch (MXU dtype), carried
#                            across the innermost ("arbitrary") V grid axis.
# --------------------------------------------------------------------------
def joint_kernel(enc_h_ref, dec_h_ref, w2_ref, b2_ref, out_ref, h_ref, *,
                 compute_dtype):
    tT = enc_h_ref.shape[1]
    tU = dec_h_ref.shape[1]
    H = enc_h_ref.shape[2]
    tV = out_ref.shape[3]

    # Recompute the joint intermediate only on the first V tile; every other
    # V tile reuses the cached (already MXU-dtype) scratch.
    @pl.when(pl.program_id(3) == 0)
    def _():
        enc_h = enc_h_ref[0].astype(compute_dtype)          # [tT, H]
        dec_h = dec_h_ref[0].astype(compute_dtype)          # [tU, H]
        h = jnp.tanh(enc_h[:, None, :] + dec_h[None, :, :])  # [tT, tU, H]
        h_ref[...] = h.reshape(tT * tU, H).astype(h_ref.dtype)

    # Single tall MXU matmul: [(tT*tU), H] @ [H, tV], f32 accumulation.
    logits = jnp.dot(h_ref[...], w2_ref[...],
                     preferred_element_type=jnp.float32)     # [tT*tU, tV]
    logits = logits + b2_ref[...]                            # bias in f32
    out_ref[0] = logits.reshape(tT, tU, tV).astype(out_ref.dtype)


def joint_pallas(enc_state, dec_state, We, Wd, b1, W2, b2, *,
                 tile_t=None, tile_u=None, tile_v=None,
                 compute_dtype=None, mxu_dtype=jnp.bfloat16,
                 out_dtype=jnp.bfloat16, vmem_limit=None):
    """JointNet: logits[b,t,u,:] = W2 @ tanh(We@enc[b,t] + Wd@dec[b,u] + b1) + b2."""
    cfg = _device_config()
    tile_t = cfg['tile_t'] if tile_t is None else tile_t
    tile_u = cfg['tile_u'] if tile_u is None else tile_u
    tile_v = cfg['tile_v'] if tile_v is None else tile_v
    compute_dtype = cfg['compute_dtype'] if compute_dtype is None else compute_dtype
    vmem_limit = cfg['vmem_limit'] if vmem_limit is None else vmem_limit

    B, T, De = enc_state.shape
    _, U, Dd = dec_state.shape
    H = We.shape[1]
    V = W2.shape[1]

    # ---- Hoisted small projections (done once, outside the lattice loop) ----
    # b1 is folded into enc_h so the kernel does a single add per (t,u,h).
    enc_h = (enc_state @ We + b1[0]).astype(jnp.bfloat16)    # [B, T, H]
    dec_h = (dec_state @ Wd).astype(jnp.bfloat16)            # [B, U, H]

    # ---- Lane-dense, (8,128)-legal tiles; pad the lattice to tile multiples ----
    tT = min(tile_t, _round_up(T, 8))
    tU = min(tile_u, _round_up(U, 8))
    tV = min(tile_v, _round_up(V, 128))
    Tp, Up, Vp = _round_up(T, tT), _round_up(U, tU), _round_up(V, tV)

    if Tp != T:
        enc_h = jnp.pad(enc_h, ((0, 0), (0, Tp - T), (0, 0)))
    if Up != U:
        dec_h = jnp.pad(dec_h, ((0, 0), (0, Up - U), (0, 0)))
    W2p = (jnp.pad(W2, ((0, 0), (0, Vp - V))) if Vp != V else W2).astype(mxu_dtype)
    b2p = (jnp.pad(b2, ((0, 0), (0, Vp - V))) if Vp != V else b2).astype(jnp.float32)

    n_t, n_u, n_v = Tp // tT, Up // tU, Vp // tV
    grid = (B, n_t, n_u, n_v)

    # Honest DMA traffic: enc/dec blocks are re-fetched per (ui,vi)/(ti,vi),
    # W2/b2 blocks are re-fetched every grid step.
    isize = lambda dt: jnp.dtype(dt).itemsize
    cost = pl.CostEstimate(
        flops=int(2.0 * B * Tp * Up * H * Vp),
        transcendentals=int(B * Tp * Up * H),
        bytes_accessed=int(
            B * Tp * Up * Vp * isize(out_dtype)                  # logits writeback
            + B * n_u * n_v * Tp * H * isize(jnp.bfloat16)       # enc_h re-streamed
            + B * n_t * n_v * Up * H * isize(jnp.bfloat16)       # dec_h re-streamed
            + B * n_t * n_u * H * Vp * isize(mxu_dtype)          # W2 re-streamed
            + B * n_t * n_u * Vp * 4),                           # b2 re-streamed
    )

    kernel = functools.partial(joint_kernel, compute_dtype=compute_dtype)

    out = pl.pallas_call(
        kernel,
        out_shape=jax.ShapeDtypeStruct((B, Tp, Up, Vp), out_dtype),
        grid=grid,
        in_specs=[
            pl.BlockSpec((1, tT, H), lambda b, ti, ui, vi: (b, ti, 0)),
            pl.BlockSpec((1, tU, H), lambda b, ti, ui, vi: (b, ui, 0)),
            pl.BlockSpec((H, tV),    lambda b, ti, ui, vi: (0, vi)),
            pl.BlockSpec((1, tV),    lambda b, ti, ui, vi: (0, vi)),
        ],
        out_specs=pl.BlockSpec((1, tT, tU, tV),
                               lambda b, ti, ui, vi: (b, ti, ui, vi)),
        scratch_shapes=[pltpu.VMEM((tT * tU, H), mxu_dtype)],
        compiler_params=pltpu.CompilerParams(
            # Outer axes parallel (megacore / v7x dual-TC sharding); the V axis
            # must be "arbitrary" because the h scratch is carried across it.
            dimension_semantics=("parallel", "parallel", "parallel", "arbitrary"),
            vmem_limit_bytes=int(vmem_limit)),
        cost_estimate=cost,
    )(enc_h, dec_h, W2p, b2p)

    # Skip the (HBM-doubling) slice entirely when no padding was introduced.
    if (Tp, Up, Vp) != (T, U, V):
        out = out[:, :T, :U, :V]
    return out


# --------------------------------------------------------------------------
# Transducer.forward
# --------------------------------------------------------------------------
def transducer_forward(params, inputs, inputs_length, targets, targets_length):
    B = targets.shape[0]
    # targets_add_blank = cat((targets, zeros), dim=1)
    zero = jnp.zeros((B, 1), dtype=targets.dtype)
    targets_add_blank = jnp.concatenate([targets, zero], axis=1)          # [B, U]

    # TODO(synk): build_encoder/build_decoder are not defined in the reference
    # module; using deterministic stand-ins (per-frame linear encoder, embedding
    # decoder). Lengths are accepted but unused by the stand-ins.
    enc_state = jnp.tanh(inputs @ params['W_encoder'])                    # [B, T, De]
    dec_state = jnp.take(params['embedding'], targets_add_blank, axis=0)  # [B, U, Dd]

    logits = joint_pallas(enc_state, dec_state,
                          params['We'], params['Wd'], params['b1'],
                          params['W2'], params['b2'])
    return logits


# Pure-JAX reference of the JointNet (concat formulation) for verification.
def joint_ref(enc_state, dec_state, We, Wd, b1, W2, b2):
    B, T, De = enc_state.shape
    _, U, Dd = dec_state.shape
    enc = jnp.broadcast_to(enc_state[:, :, None, :], (B, T, U, De))
    dec = jnp.broadcast_to(dec_state[:, None, :, :], (B, T, U, Dd))
    concat = jnp.concatenate([enc, dec], axis=-1)                 # [B,T,U,De+Dd]
    W1 = jnp.concatenate([We, Wd], axis=0)                        # [De+Dd, H]
    h = jnp.tanh(concat @ W1 + b1[0])
    return h @ W2 + b2[0]


if __name__ == "__main__":
    key = jax.random.PRNGKey(0)
    ks = jax.random.split(key, 8)

    # Small shapes consistent with the module.
    B, T, F = 2, 8, 16          # batch, encoder frames, acoustic features
    U_tgt = 7                   # target length (U = U_tgt + 1 after blank append)
    De, Dd = 16, 16             # encoder / decoder output dims
    H = 32                      # config['joint']['inner_size']
    V = 16                      # config['vocab_size']

    params = {
        'W_encoder': 0.1 * jax.random.normal(ks[0], (F, De), jnp.float32),
        'embedding': 0.1 * jax.random.normal(ks[1], (V, Dd), jnp.float32),
        'We':        0.1 * jax.random.normal(ks[2], (De, H), jnp.float32),
        'Wd':        0.1 * jax.random.normal(ks[3], (Dd, H), jnp.float32),
        'b1':        0.1 * jax.random.normal(ks[4], (1, H), jnp.float32),
        'W2':        0.1 * jax.random.normal(ks[5], (H, V), jnp.float32),
        'b2':        0.1 * jax.random.normal(ks[6], (1, V), jnp.float32),
    }

    inputs = jax.random.normal(ks[7], (B, T, F), jnp.float32)
    inputs_length = jnp.full((B,), T, dtype=jnp.int32)
    targets = jax.random.randint(jax.random.PRNGKey(1), (B, U_tgt), 0, V,
                                 dtype=jnp.int32)
    targets_length = jnp.full((B,), U_tgt, dtype=jnp.int32)

    logits = transducer_forward(params, inputs, inputs_length,
                                targets, targets_length)
    logits = jax.block_until_ready(logits)

    # Verify against the pure-JAX concat-based reference (f32).  The kernel
    # uses bf16 MXU operands (+ bf16 logits writeback) with f32 accumulation,
    # hence the relaxed tolerance.
    zero = jnp.zeros((B, 1), dtype=targets.dtype)
    tab = jnp.concatenate([targets, zero], axis=1)
    enc_state = jnp.tanh(inputs @ params['W_encoder'])
    dec_state = jnp.take(params['embedding'], tab, axis=0)
    ref = joint_ref(enc_state, dec_state, params['We'], params['Wd'],
                    params['b1'], params['W2'], params['b2'])

    assert logits.shape == (B, T, U_tgt + 1, V), logits.shape
    err = float(jnp.max(jnp.abs(logits.astype(jnp.float32) - ref)))
    assert jnp.allclose(logits.astype(jnp.float32), ref, atol=2e-2, rtol=2e-2), err
    print("KERNEL_OK")
</pallas_src>

<mosaic_0001>
module attributes {stable_mosaic.version = 11 : i64} {
  func.func @joint_kernel(%arg0: i32, %arg1: i32, %arg2: i32, %arg3: i32, %arg4: memref<1x8x32xbf16, #tpu.memory_space<vmem>>, %arg5: memref<1x8x32xbf16, #tpu.memory_space<vmem>>, %arg6: memref<32x128xbf16, #tpu.memory_space<vmem>>, %arg7: memref<1x128xf32, #tpu.memory_space<vmem>>, %arg8: memref<1x8x8x128xbf16, #tpu.memory_space<vmem>>, %arg9: memref<64x32xbf16, #tpu.memory_space<vmem>>) attributes {dimension_semantics = [#tpu.dimension_semantics<parallel>, #tpu.dimension_semantics<parallel>, #tpu.dimension_semantics<parallel>, #tpu.dimension_semantics<arbitrary>], iteration_bounds = array<i64: 2, 1, 1, 1>, scalar_prefetch = 0 : i64, scratch_operands = 1 : i64, tpu.core_type = #tpu.core_type<tc>, window_params = [{transform_indices = @transform_0, window_bounds = array<i64: 1, 8, 32>}, {transform_indices = @transform_1, window_bounds = array<i64: 1, 8, 32>}, {transform_indices = @transform_2, window_bounds = array<i64: 32, 128>}, {transform_indices = @transform_3, window_bounds = array<i64: 1, 128>}, {transform_indices = @transform_4, window_bounds = array<i64: 1, 8, 8, 128>}]} {
    %c0_i32 = arith.constant 0 : i32
    %0 = arith.cmpi eq, %arg3, %c0_i32 : i32
    %1 = arith.extui %0 : i1 to i32
    %c0_i32_0 = arith.constant 0 : i32
    %2 = arith.cmpi ne, %1, %c0_i32_0 : i32
    scf.if %2 {
      %c0_10 = arith.constant 0 : index
      %c0_11 = arith.constant 0 : index
      %c0_12 = arith.constant 0 : index
      %14 = vector.load %arg4[%c0_10, %c0_11, %c0_12] : memref<1x8x32xbf16, #tpu.memory_space<vmem>>, vector<1x8x32xbf16>
      %15 = vector.shape_cast %14 : vector<1x8x32xbf16> to vector<8x32xbf16>
      %c0_13 = arith.constant 0 : index
      %c0_14 = arith.constant 0 : index
      %c0_15 = arith.constant 0 : index
      %16 = vector.load %arg5[%c0_13, %c0_14, %c0_15] : memref<1x8x32xbf16, #tpu.memory_space<vmem>>, vector<1x8x32xbf16>
      %17 = vector.shape_cast %16 : vector<1x8x32xbf16> to vector<8x32xbf16>
      %18 = vector.shape_cast %15 : vector<8x32xbf16> to vector<8x1x32xbf16>
      %19 = vector.shape_cast %17 : vector<8x32xbf16> to vector<1x8x32xbf16>
      %20 = vector.broadcast %18 : vector<8x1x32xbf16> to vector<8x8x32xbf16>
      %21 = vector.broadcast %19 : vector<1x8x32xbf16> to vector<8x8x32xbf16>
      %22 = arith.addf %20, %21 : vector<8x8x32xbf16>
      %23 = math.tanh %22 : vector<8x8x32xbf16>
      %24 = vector.shape_cast %23 : vector<8x8x32xbf16> to vector<64x32xbf16>
      %c0_16 = arith.constant 0 : index
      %c0_17 = arith.constant 0 : index
      %25 = vector.load %arg9[%c0_16, %c0_17] : memref<64x32xbf16, #tpu.memory_space<vmem>>, vector<64x32xbf16>
      tpu.vector_store %arg9[%c0_16, %c0_17], %24 {strides = array<i32>} : memref<64x32xbf16, #tpu.memory_space<vmem>>, vector<64x32xbf16>,
    } else {
    }
    %c0 = arith.constant 0 : index
    %c0_1 = arith.constant 0 : index
    %3 = vector.load %arg9[%c0, %c0_1] : memref<64x32xbf16, #tpu.memory_space<vmem>>, vector<64x32xbf16>
    %c0_2 = arith.constant 0 : index
    %c0_3 = arith.constant 0 : index
    %4 = vector.load %arg6[%c0_2, %c0_3] : memref<32x128xbf16, #tpu.memory_space<vmem>>, vector<32x128xbf16>
    %cst = arith.constant dense<0.000000e+00> : vector<64x128xf32>
    %5 = tpu.matmul %3, %4, %cst {dimension_numbers = #tpu.dot_dimension_numbers<[1], [0], [0], [1], [0, 0, 1, 1], [], []>} : vector<64x32xbf16>, vector<32x128xbf16>, vector<64x128xf32> -> vector<64x128xf32>
    %c0_4 = arith.constant 0 : index
    %c0_5 = arith.constant 0 : index
    %6 = vector.load %arg7[%c0_4, %c0_5] : memref<1x128xf32, #tpu.memory_space<vmem>>, vector<1x128xf32>
    %7 = vector.broadcast %6 : vector<1x128xf32> to vector<64x128xf32>
    %8 = arith.addf %5, %7 : vector<64x128xf32>
    %9 = vector.shape_cast %8 : vector<64x128xf32> to vector<8x8x128xf32>
    %10 = arith.truncf %9 : vector<8x8x128xf32> to vector<8x8x128xbf16>
    %c0_6 = arith.constant 0 : index
    %c0_7 = arith.constant 0 : index
    %c0_8 = arith.constant 0 : index
    %c0_9 = arith.constant 0 : index
    %11 = vector.load %arg8[%c0_6, %c0_7, %c0_8, %c0_9] : memref<1x8x8x128xbf16, #tpu.memory_space<vmem>>, vector<1x8x8x128xbf16>
    %12 = vector.shape_cast %11 : vector<1x8x8x128xbf16> to vector<8x8x128xbf16>
    %13 = vector.shape_cast %10 : vector<8x8x128xbf16> to vector<1x8x8x128xbf16>
    tpu.vector_store %arg8[%c0_6, %c0_7, %c0_8, %c0_9], %13 {strides = array<i32>} : memref<1x8x8x128xbf16, #tpu.memory_space<vmem>>, vector<1x8x8x128xbf16>,
    return
  }
  func.func @transform_0(%arg0: i32, %arg1: i32, %arg2: i32, %arg3: i32) -> (i32, i32, i32) {
    %c0_i32 = arith.constant 0 : i32
    %c0_i32_0 = arith.constant 0 : i32
    return %arg0, %arg1, %c0_i32 : i32, i32, i32
  }
  func.func @transform_1(%arg0: i32, %arg1: i32, %arg2: i32, %arg3: i32) -> (i32, i32, i32) {
    %c0_i32 = arith.constant 0 : i32
    %c0_i32_0 = arith.constant 0 : i32
    return %arg0, %arg2, %c0_i32 : i32, i32, i32
  }
  func.func @transform_2(%arg0: i32, %arg1: i32, %arg2: i32, %arg3: i32) -> (i32, i32) {
    %c0_i32 = arith.constant 0 : i32
    %c0_i32_0 = arith.constant 0 : i32
    return %c0_i32, %arg3 : i32, i32
  }
  func.func @transform_3(%arg0: i32, %arg1: i32, %arg2: i32, %arg3: i32) -> (i32, i32) {
    %c0_i32 = arith.constant 0 : i32
    %c0_i32_0 = arith.constant 0 : i32
    return %c0_i32, %arg3 : i32, i32
  }
  func.func @transform_4(%arg0: i32, %arg1: i32, %arg2: i32, %arg3: i32) -> (i32, i32, i32, i32) {
    %c0_i32 = arith.constant 0 : i32
    return %arg0, %arg1, %arg2, %arg3 : i32, i32, i32, i32
  }
}

</mosaic_0001>

<llo_original>
// kernel: tpu_custom_call.1
$region0: #{tpu_custom_call.1}
  #allocation0 [shape = 'u32[]', space=smem, size = 0x4, offset = 0x4, fixed_abs, tag = 'smem constant byte address 0x4 - core index']
  #allocation1 [shape = 'u32[144,128]{1,0:T(1,128)}', space=vmem, size = 0x12000, scoped, tag = 'internal scratch']
  #allocation2 [shape = 'bf16[64,32]{1,0:T(16,128)(2,1)}', space=vmem, size = 0x4000, scoped, tag = 'scratch operand']
  %s0 = inlined_call_operand.hbm [shape: bf16[2,8,32], index: 0, kind: input, shape index: {}]
  %s1 = inlined_call_operand.hbm [shape: bf16[2,8,32], index: 1, kind: input, shape index: {}]
  %s2 = inlined_call_operand.hbm [shape: bf16[32,128], index: 2, kind: input, shape index: {}]
  %s3 = inlined_call_operand.hbm [shape: f32[1,128], index: 3, kind: input, shape index: {}]
  %s4 = inlined_call_operand.hbm [shape: bf16[2,8,8,128], index: 4, kind: output, shape index: {}]
  %s5 = sld [smem:[#allocation0]]
  $region69: #{tpu_custom_call.1} parent=0
    _
  %s7 = ssub.s32 1, %s5
  %s8 = scalar_select 0, %s7, %s5
  $region1: #{tpu_custom_call.1} parent=0
    #allocation3 [shape = 'u8[4096]{0}', space=vmem, size = 0x1000, scoped, tag = 'input window, operand 0']
    #allocation4 [shape = 's32[2]{0}', space=sflag, size = 0x8, scoped, tag = 'scoped memory for tpu_custom_call.1']
    #allocation5 [shape = 's32[2]{0}', space=sflag, size = 0x8, scoped, tag = 'scoped memory for tpu_custom_call.1']
    #allocation6 [shape = 'u8[4096]{0}', space=vmem, size = 0x1000, scoped, tag = 'input window, operand 1']
    #allocation7 [shape = 's32[2]{0}', space=sflag, size = 0x8, scoped, tag = 'scoped memory for tpu_custom_call.1']
    #allocation8 [shape = 'u8[8192]{0}', space=vmem, size = 0x2000, scoped, tag = 'input window, operand 2, single buffered']
    #allocation9 [shape = 'u8[512]{0}', space=vmem, size = 0x400, scoped, tag = 'input window, operand 3, single buffered']
    #allocation10 [shape = 's32[1]{0}', space=sflag, size = 0x4, scoped, tag = 'scoped memory for tpu_custom_call.1']
    #allocation11 [shape = 'u8[32768]{0}', space=vmem, size = 0x8000, scoped, tag = 'output window, operand 0']
    %9 = vsyncpa [#allocation4], 0
    %s10 = scalar_lea.sflag [#allocation4], 1
    %11 = vsyncpa %s10, 0
    %12 = vsyncpa [#allocation7], 0
    %s13 = scalar_lea.sflag [#allocation7], 1
    %14 = vsyncpa %s13, 0
    %15 = vsyncpa [#allocation10], 0
    %16 = vsyncpa [#allocation5], 0
    %s17 = scalar_lea.sflag [#allocation5], 1
    %18 = vsyncpa %s17, 0
    loop: start=0, step=1, limit=4
    $region2: #{tpu_custom_call.1} parent=1 // loop_pre_header
      _
    $region3: #{tpu_custom_call.1} parent=1 // loop_header
      %s20 = sphi 0, %s24
      %p21 = scmp.ge.s32.totalorder %s20, 4
      %s27 = sphi 0, %s53
      %s28 = sphi 0, %s49
      %s29 = sphi 0, %s45
      %s30 = sphi 0, %s41
      %s31 = sphi 0, %s27
      %s32 = sphi 0, %s28
      %s33 = sphi 0, %s29
      %s34 = sphi 0, %s30
      %s35 = sphi 0, %s31
      %s36 = sphi 0, %s32
      %s37 = sphi 0, %s33
      %s38 = sphi 0, %s34
      %s58 = sphi 0, %s60
      %s61 = sphi 0, %s58
      %s62 = sphi 0, %s61
      %s78 = sphi 0, %s62
      %s86 = sphi 0, %s88
      %s89 = sphi 0, %s86
      %s90 = sphi 0, %s89
      %s106 = sphi 0, %s90
      %s112 = sphi 0, %s114
      %s115 = sphi 0, %s112
      %s116 = sphi 0, %s115
      %s132 = sphi 0, %s116
      %s138 = sphi 0, %s140
      %s141 = sphi 0, %s138
      %s142 = sphi 0, %s141
      %s158 = sphi 0, %s142
      %s170 = sphi 0, %s172
      %s173 = sphi 0, %s170
      %s174 = sphi 0, %s173
      %s190 = sphi 0, %s174
    $region4: #{tpu_custom_call.1} parent=1 // loop_header_branch
      %23 = sbr.rel (%p21) target = $region8
    $region5: #{tpu_custom_call.1} parent=1 // loop_body
      %s25 = ssub.s32 %s20, 1
      %s26 = ssub.s32 %s20, 2
      %s39 = sadd.s32 1, %s30
      %p40 = scmp.ge.s32.totalorder %s39, 1
      %s41 = scalar_select %p40, 0, %s39
      %s42 = sadd.s32 1, %s29
      %s43 = scalar_select %p40, %s42, %s29
      %p44 = scmp.ge.s32.totalorder %s43, 1
      %s45 = scalar_select %p44, 0, %s43
      %s46 = sadd.s32 1, %s28
      %s47 = scalar_select %p44, %s46, %s28
      %p48 = scmp.ge.s32.totalorder %s47, 1
      %s49 = scalar_select %p48, 0, %s47
      %s50 = sadd.s32 1, %s27
      %s51 = scalar_select %p48, %s50, %s27
      %p52 = scmp.ge.s32.totalorder %s51, 2
      %s53 = scalar_select %p52, 0, %s51
      %s54 = ssub.s32 %s27, %s53
      %s55 = ssub.s32 %s28, %s49
      %s56 = sor.u32 %s54, %s55
      %p57 = scmp.eq.s32.totalorder %s56, 0
      %s59 = sadd.s32 %s58, 1
      %s60 = scalar_select %p57, %s58, %s59
      %p63 = pneg %p57
      %p64 = scmp.eq.s32.totalorder %s20, 1
      %p65 = por %p63, %p64
      %p66 = scmp.ne.s32.totalorder %s58, %s61
      %p67 = scmp.eq.s32.totalorder %s20, 0
      %p68 = por %p66, %p67
      %p69 = scmp.ne.s32.totalorder %s58, %s61
      %p70 = scmp.eq.s32.totalorder %s25, 1
      %p71 = por %p69, %p70
      %p72 = scmp.ne.s32.totalorder %s61, %s62
      %p73 = scmp.eq.s32.totalorder %s25, 0
      %p74 = por %p72, %p73
      %p75 = scmp.ne.s32.totalorder %s61, %s62
      %p76 = scmp.eq.s32.totalorder %s26, 1
      %p77 = por %p75, %p76
      %p79 = scmp.ne.s32.totalorder %s62, %s78
      %p80 = scmp.eq.s32.totalorder %s26, 0
      %p81 = por %p79, %p80
      %s82 = ssub.s32 %s27, %s53
      %s83 = ssub.s32 %s29, %s45
      %s84 = sor.u32 %s82, %s83
      %p85 = scmp.eq.s32.totalorder %s84, 0
      %s87 = sadd.s32 %s86, 1
      %s88 = scalar_select %p85, %s86, %s87
      %p91 = pneg %p85
      %p92 = scmp.eq.s32.totalorder %s20, 1
      %p93 = por %p91, %p92
      %p94 = scmp.ne.s32.totalorder %s86, %s89
      %p95 = scmp.eq.s32.totalorder %s20, 0
      %p96 = por %p94, %p95
      %p97 = scmp.ne.s32.totalorder %s86, %s89
      %p98 = scmp.eq.s32.totalorder %s25, 1
      %p99 = por %p97, %p98
      %p100 = scmp.ne.s32.totalorder %s89, %s90
      %p101 = scmp.eq.s32.totalorder %s25, 0
      %p102 = por %p100, %p101
      %p103 = scmp.ne.s32.totalorder %s89, %s90
      %p104 = scmp.eq.s32.totalorder %s26, 1
      %p105 = por %p103, %p104
      %p107 = scmp.ne.s32.totalorder %s90, %s106
      %p108 = scmp.eq.s32.totalorder %s26, 0
      %p109 = por %p107, %p108
      %s110 = ssub.s32 %s30, %s41
      %p111 = scmp.eq.s32.totalorder %s110, 0
      %s113 = sadd.s32 %s112, 1
      %s114 = scalar_select %p111, %s112, %s113
      %p117 = pneg %p111
      %p118 = scmp.eq.s32.totalorder %s20, 1
      %p119 = por %p117, %p118
      %p120 = scmp.ne.s32.totalorder %s112, %s115
      %p121 = scmp.eq.s32.totalorder %s20, 0
      %p122 = por %p120, %p121
      %p123 = scmp.ne.s32.totalorder %s112, %s115
      %p124 = scmp.eq.s32.totalorder %s25, 1
      %p125 = por %p123, %p124
      %p126 = scmp.ne.s32.totalorder %s115, %s116
      %p127 = scmp.eq.s32.totalorder %s25, 0
      %p128 = por %p126, %p127
      %p129 = scmp.ne.s32.totalorder %s115, %s116
      %p130 = scmp.eq.s32.totalorder %s26, 1
      %p131 = por %p129, %p130
      %p133 = scmp.ne.s32.totalorder %s116, %s132
      %p134 = scmp.eq.s32.totalorder %s26, 0
      %p135 = por %p133, %p134
      %s136 = ssub.s32 %s30, %s41
      %p137 = scmp.eq.s32.totalorder %s136, 0
      %s139 = sadd.s32 %s138, 1
      %s140 = scalar_select %p137, %s138, %s139
      %p143 = pneg %p137
      %p144 = scmp.eq.s32.totalorder %s20, 1
      %p145 = por %p143, %p144
      %p146 = scmp.ne.s32.totalorder %s138, %s141
      %p147 = scmp.eq.s32.totalorder %s20, 0
      %p148 = por %p146, %p147
      %p149 = scmp.ne.s32.totalorder %s138, %s141
      %p150 = scmp.eq.s32.totalorder %s25, 1
      %p151 = por %p149, %p150
      %p152 = scmp.ne.s32.totalorder %s141, %s142
      %p153 = scmp.eq.s32.totalorder %s25, 0
      %p154 = por %p152, %p153
      %p155 = scmp.ne.s32.totalorder %s141, %s142
      %p156 = scmp.eq.s32.totalorder %s26, 1
      %p157 = por %p155, %p156
      %p159 = scmp.ne.s32.totalorder %s142, %s158
      %p160 = scmp.eq.s32.totalorder %s26, 0
      %p161 = por %p159, %p160
      %s162 = ssub.s32 %s27, %s53
      %s163 = ssub.s32 %s28, %s49
      %s164 = sor.u32 %s162, %s163
      %s165 = ssub.s32 %s29, %s45
      %s166 = sor.u32 %s164, %s165
      %s167 = ssub.s32 %s30, %s41
      %s168 = sor.u32 %s166, %s167
      %p169 = scmp.eq.s32.totalorder %s168, 0
      %s171 = sadd.s32 %s170, 1
      %s172 = scalar_select %p169, %s170, %s171
      %p175 = pneg %p169
      %p176 = scmp.eq.s32.totalorder %s20, 1
      %p177 = por %p175, %p176
      %p178 = scmp.ne.s32.totalorder %s170, %s173
      %p179 = scmp.eq.s32.totalorder %s20, 0
      %p180 = por %p178, %p179
      %p181 = scmp.ne.s32.totalorder %s170, %s173
      %p182 = scmp.eq.s32.totalorder %s25, 1
      %p183 = por %p181, %p182
      %p184 = scmp.ne.s32.totalorder %s173, %s174
      %p185 = scmp.eq.s32.totalorder %s25, 0
      %p186 = por %p184, %p185
      %p187 = scmp.ne.s32.totalorder %s173, %s174
      %p188 = scmp.eq.s32.totalorder %s26, 1
      %p189 = por %p187, %p188
      %p191 = scmp.ne.s32.totalorder %s174, %s190
      %p192 = scmp.eq.s32.totalorder %s26, 0
      %p193 = por %p191, %p192
      %p194 = scmp.le.s32.totalorder 1, %s20
      %p195 = scmp.lt.s32.totalorder %s20, 3
      %p196 = pnand %p194, %p195
      %p197 = pneg %p196
      // Predicated region
      $region9: #{tpu_custom_call.1} parent=5 // pred_check
        _
      $region10: #{tpu_custom_call.1} parent=5 // pred_check_branch
        %199 = sbr.rel (%p196) target = $region12
      $region11: #{tpu_custom_call.1} parent=5 // pred_region
        %s200 = ssub.s32 %s20, 1
        // Predicated region
        $region13: #{tpu_custom_call.1} parent=11 // pred_check
          %p201 = pneg %p128
        $region14: #{tpu_custom_call.1} parent=11 // pred_check_branch
          %203 = sbr.rel (%p201) target = $region16
        $region15: #{tpu_custom_call.1} parent=11 // pred_region
          %s205 = ssub.s32 256, 256
          %206 = vsyncadd [#allocation7], %s205
          %s207 = smul.addr %s34, 64
          %s208 = scalar_lea.hbm %s2, %s207
          %s209 = sshll.u32 [#allocation8], 4
          %s210 = int_to_ptr.vmem [resolvable:$true] %s209
          %215 = dma.hbm_to_vmem [thread:$0]  %s208, 256, %s210, [#allocation7], 64, 64, 4
        $region16: #{tpu_custom_call.1} parent=11 // pred_fallthru
          _
        // Predicated region
        $region17: #{tpu_custom_call.1} parent=11 // pred_check
          %p216 = pneg %p154
        $region18: #{tpu_custom_call.1} parent=11 // pred_check_branch
          %218 = sbr.rel (%p216) target = $region20
        $region19: #{tpu_custom_call.1} parent=11 // pred_region
          %s220 = ssub.s32 16, 16
          %221 = vsyncadd [#allocation10], %s220
          %s222 = smul.addr %s34, 16
          %s223 = scalar_lea.hbm %s3, %s222
          %s225 = sshll.u32 [#allocation9], 4
          %s226 = int_to_ptr.vmem [resolvable:$true] %s225
          %228 = dma.hbm_to_vmem [thread:$0]  %s223, 16, %s226, [#allocation10]
        $region20: #{tpu_custom_call.1} parent=11 // pred_fallthru
          _
      $region12: #{tpu_custom_call.1} parent=5 // pred_fallthru
        _
      %p229 = scmp.lt.s32.totalorder %s20, 2
      // Predicated region
      $region21: #{tpu_custom_call.1} parent=5 // pred_check
        %p230 = pneg %p229
      $region22: #{tpu_custom_call.1} parent=5 // pred_check_branch
        %232 = sbr.rel (%p230) target = $region24
      $region23: #{tpu_custom_call.1} parent=5 // pred_region
        // Predicated region
        $region25: #{tpu_custom_call.1} parent=23 // pred_check
          %p233 = pneg %p68
        $region26: #{tpu_custom_call.1} parent=23 // pred_check_branch
          %235 = sbr.rel (%p233) target = $region28
        $region27: #{tpu_custom_call.1} parent=23 // pred_region
          %s236 = sand.u32 %s58, 1
          %s237 = scalar_lea.sflag [#allocation4], %s236
          %s238 = sand.u32 %s58, 1
          %s239 = smul.addr %s238, 4
          %s240 = scalar_lea.vmem [#allocation3], %s239
          %s242 = ssub.s32 64, 64
          %243 = vsyncadd %s237, %s242
          %s244 = sadd.s32 %s28, %s27
          %s245 = smul.addr %s244, 64
          %s246 = scalar_lea.hbm %s0, %s245
          %s248 = sshll.u32 %s240, 4
          %s249 = int_to_ptr.vmem [resolvable:$true] %s248
          %251 = dma.hbm_to_vmem [thread:$0]  %s246, 64, %s249, %s237
        $region28: #{tpu_custom_call.1} parent=23 // pred_fallthru
          _
        // Predicated region
        $region29: #{tpu_custom_call.1} parent=23 // pred_check
          %p252 = pneg %p96
        $region30: #{tpu_custom_call.1} parent=23 // pred_check_branch
          %254 = sbr.rel (%p252) target = $region32
        $region31: #{tpu_custom_call.1} parent=23 // pred_region
          %s255 = sand.u32 %s20, 1
          %s256 = scalar_lea.sflag [#allocation7], %s255
          %s257 = sand.u32 %s86, 1
          %s258 = smul.addr %s257, 4
          %s259 = scalar_lea.vmem [#allocation6], %s258
          %s261 = ssub.s32 64, 64
          %262 = vsyncadd %s256, %s261
          %s263 = sadd.s32 %s29, %s27
          %s264 = smul.addr %s263, 64
          %s265 = scalar_lea.hbm %s1, %s264
          %s267 = sshll.u32 %s259, 4
          %s268 = int_to_ptr.vmem [resolvable:$true] %s267
          %270 = dma.hbm_to_vmem [thread:$0]  %s265, 64, %s268, %s256
        $region32: #{tpu_custom_call.1} parent=23 // pred_fallthru
          _
      $region24: #{tpu_custom_call.1} parent=5 // pred_fallthru
        _
      %p271 = scmp.le.s32.totalorder 1, %s20
      %p272 = scmp.lt.s32.totalorder %s20, 3
      %p273 = pnand %p271, %p272
      %p274 = pneg %p273
      // Predicated region
      $region33: #{tpu_custom_call.1} parent=5 // pred_check
        _
      $region34: #{tpu_custom_call.1} parent=5 // pred_check_branch
        %276 = sbr.rel (%p273) target = $region36
      $region35: #{tpu_custom_call.1} parent=5 // pred_region
        %s277 = ssub.s32 %s20, 1
        %s278 = sand.u32 %s61, 1
        %s279 = scalar_lea.sflag [#allocation4], %s278
        %s280 = sand.u32 %s61, 1
        %s281 = smul.addr %s280, 4
        %s282 = scalar_lea.vmem [#allocation3], %s281
        // Predicated region
        $region37: #{tpu_custom_call.1} parent=35 // pred_check
          %p283 = pneg %p74
        $region38: #{tpu_custom_call.1} parent=35 // pred_check_branch
          %285 = sbr.rel (%p283) target = $region40
        $region39: #{tpu_custom_call.1} parent=35 // pred_region
          %286 = dma.done %s279, 64
        $region40: #{tpu_custom_call.1} parent=35 // pred_fallthru
          _
        %s287 = sand.u32 %s25, 1
        %s288 = scalar_lea.sflag [#allocation7], %s287
        %s289 = sand.u32 %s89, 1
        %s290 = smul.addr %s289, 4
        %s291 = scalar_lea.vmem [#allocation6], %s290
        // Predicated region
        $region41: #{tpu_custom_call.1} parent=35 // pred_check
          %p292 = pneg %p102
        $region42: #{tpu_custom_call.1} parent=35 // pred_check_branch
          %294 = sbr.rel (%p292) target = $region44
        $region43: #{tpu_custom_call.1} parent=35 // pred_region
          %295 = dma.done %s288, 64
        $region44: #{tpu_custom_call.1} parent=35 // pred_fallthru
          _
        // Predicated region
        $region45: #{tpu_custom_call.1} parent=35 // pred_check
          %p296 = pneg %p128
        $region46: #{tpu_custom_call.1} parent=35 // pred_check_branch
          %298 = sbr.rel (%p296) target = $region48
        $region47: #{tpu_custom_call.1} parent=35 // pred_region
          %299 = dma.done [#allocation7], 256
        $region48: #{tpu_custom_call.1} parent=35 // pred_fallthru
          _
        // Predicated region
        $region49: #{tpu_custom_call.1} parent=35 // pred_check
          %p300 = pneg %p154
        $region50: #{tpu_custom_call.1} parent=35 // pred_check_branch
          %302 = sbr.rel (%p300) target = $region52
        $region51: #{tpu_custom_call.1} parent=35 // pred_region
          %303 = dma.done [#allocation10], 16
        $region52: #{tpu_custom_call.1} parent=35 // pred_fallthru
          _
        %s304 = sand.u32 %s61, 1
        %s305 = scalar_lea.sflag [#allocation4], %s304
        %s306 = sand.u32 %s61, 1
        %s307 = smul.addr %s306, 4
        %s308 = scalar_lea.vmem [#allocation3], %s307
        %p309 = pneg %p74
        %p310 = pneg %p71
        %s311 = sand.u32 %s25, 1
        %s312 = scalar_lea.sflag [#allocation7], %s311
        %s313 = sand.u32 %s89, 1
        %s314 = smul.addr %s313, 4
        %s315 = scalar_lea.vmem [#allocation6], %s314
        %p316 = pneg %p102
        %p317 = pneg %p99
        %p318 = pneg %p128
        %p319 = pneg %p125
        %p320 = pneg %p154
        %p321 = pneg %p151
        %p322 = pneg %p186
        %p323 = pneg %p183
        %s324 = sand.u32 %s173, 1
        %s325 = scalar_lea.sflag [#allocation5], %s324
        %s326 = sand.u32 %s173, 1
        %s327 = smul.addr %s326, 32
        %s328 = scalar_lea.vmem [#allocation11], %s327
        %s329 = smul.u32 8, %s32
        %p331 = scmp.eq.s32.totalorder %s34, 0
        // Predicated region
        $region53: #{tpu_custom_call.1} parent=35 // pred_check
          %p332 = pneg %p331
        $region54: #{tpu_custom_call.1} parent=35 // pred_check_branch
          %334 = sbr.rel (%p332) target = $region56
        $region55: #{tpu_custom_call.1} parent=35 // pred_region
          %v335 = vld [vmem:[%s282] sm:$0xf]
          %v336 = vld [vmem:[%s291] sm:$0xf]
          %v339 = vunpack.c.l.s4 1966171168
          %v340 = vunpack.c.0.s8 %v339
          %v341 = vlaneseq
          %v342 = vshrl.u32 %v341, 7
          %v343 = vsub.s32 %v340, %v342
          %v344 = vrot.slane %v335, %v343
          %v345 = vcombine.high %v344, %v344
          %v347 = vunpack.c.l.s4 1966171168
          %v348 = vunpack.c.0.s8 %v347
          %v349 = vlaneseq
          %v350 = vshrl.u32 %v349, 7
          %v351 = vsub.s32 %v348, %v350
          %v352 = vrot.slane %v344, %v351
          %v354 = vunpack.c.l.s4 1966171168
          %v355 = vunpack.c.0.s8 %v354
          %v356 = vlaneseq
          %v357 = vshrl.u32 %v356, 7
          %v358 = vsub.s32 %v355, %v357
          %v359 = vrot.slane %v345, %v358
          %v360 = vcombine.high %v352, %v352
          %v361 = vcombine.high %v359, %v359
          %v362 = vunpack.i.l.s16 %v352
          %v363 = vunpack.i.h.s16 %v352
          %v364 = vunpack.i.l.s16 %v359
          %v365 = vunpack.i.h.s16 %v359
          %v366 = vunpack.i.l.s16 %v360
          %v367 = vunpack.i.h.s16 %v360
          %v368 = vunpack.i.l.s16 %v361
          %v369 = vunpack.i.h.s16 %v361
          %v370 = vpack.i.b16 %v362, %v362
          %v371 = vpack.i.b16 %v363, %v363
          %v372 = vpack.i.b16 %v364, %v364
          %v373 = vpack.i.b16 %v365, %v365
          %v374 = vpack.i.b16 %v366, %v366
          %v375 = vpack.i.b16 %v367, %v367
          %v376 = vpack.i.b16 %v368, %v368
          %v377 = vpack.i.b16 %v369, %v369
          %v378 = vlaneseq
          %v379 = vshrl.u32 %v378, 7
          %v380 = vsub.s32 0, %v379
          %v381 = vrot.slane %v370, %v380
          %v382 = vlaneseq
          %v383 = vshrl.u32 %v382, 7
          %v384 = vsub.s32 0, %v383
          %v385 = vrot.slane %v371, %v384
          %v386 = vlaneseq
          %v387 = vshrl.u32 %v386, 7
          %v388 = vsub.s32 0, %v387
          %v389 = vrot.slane %v372, %v388
          %v390 = vlaneseq
          %v391 = vshrl.u32 %v390, 7
          %v392 = vsub.s32 0, %v391
          %v393 = vrot.slane %v373, %v392
          %v394 = vlaneseq
          %v395 = vshrl.u32 %v394, 7
          %v396 = vsub.s32 0, %v395
          %v397 = vrot.slane %v374, %v396
          %v398 = vlaneseq
          %v399 = vshrl.u32 %v398, 7
          %v400 = vsub.s32 0, %v399
          %v401 = vrot.slane %v375, %v400
          %v402 = vlaneseq
          %v403 = vshrl.u32 %v402, 7
          %v404 = vsub.s32 0, %v403
          %v405 = vrot.slane %v376, %v404
          %v406 = vlaneseq
          %v407 = vshrl.u32 %v406, 7
          %v408 = vsub.s32 0, %v407
          %v409 = vrot.slane %v377, %v408
          %v411 = vpack.i.b16 %v381, %v381
          %v413 = vlaneseq
          %v414 = vshrl.u32 %v413, 7
          %v415 = vsub.s32 0, %v414
          %v416 = vrot.slane %v411, %v415
          %v418 = vpack.i.b16 %v385, %v385
          %v420 = vlaneseq
          %v421 = vshrl.u32 %v420, 7
          %v422 = vsub.s32 0, %v421
          %v423 = vrot.slane %v418, %v422
          %v425 = vpack.i.b16 %v389, %v389
          %v427 = vlaneseq
          %v428 = vshrl.u32 %v427, 7
          %v429 = vsub.s32 0, %v428
          %v430 = vrot.slane %v425, %v429
          %v432 = vpack.i.b16 %v393, %v393
          %v434 = vlaneseq
          %v435 = vshrl.u32 %v434, 7
          %v436 = vsub.s32 0, %v435
          %v437 = vrot.slane %v432, %v436
          %v439 = vpack.i.b16 %v397, %v397
          %v441 = vlaneseq
          %v442 = vshrl.u32 %v441, 7
          %v443 = vsub.s32 0, %v442
          %v444 = vrot.slane %v439, %v443
          %v446 = vpack.i.b16 %v401, %v401
          %v448 = vlaneseq
          %v449 = vshrl.u32 %v448, 7
          %v450 = vsub.s32 0, %v449
          %v451 = vrot.slane %v446, %v450
          %v453 = vpack.i.b16 %v405, %v405
          %v455 = vlaneseq
          %v456 = vshrl.u32 %v455, 7
          %v457 = vsub.s32 0, %v456
          %v458 = vrot.slane %v453, %v457
          %v460 = vpack.i.b16 %v409, %v409
          %v462 = vlaneseq
          %v463 = vshrl.u32 %v462, 7
          %v464 = vsub.s32 0, %v463
          %v465 = vrot.slane %v460, %v464
          %v466 = vadd.bf16 %v416, %v336
          %v467 = vadd.bf16 %v423, %v336
          %v468 = vadd.bf16 %v430, %v336
          %v469 = vadd.bf16 %v437, %v336
          %v470 = vadd.bf16 %v444, %v336
          %v471 = vadd.bf16 %v451, %v336
          %v472 = vadd.bf16 %v458, %v336
          %v473 = vadd.bf16 %v465, %v336
          %v474 = vtanh.bf16.pop %v466
          %v475 = vtanh.bf16.pop %v467
          %v476 = vtanh.bf16.pop %v468
          %v477 = vtanh.bf16.pop %v469
          %v478 = vtanh.bf16.pop %v470
          %v479 = vtanh.bf16.pop %v471
          %v480 = vtanh.bf16.pop %v472
          %v481 = vtanh.bf16.pop %v473
          %v490 = vunpack.c.l.b16 %v474
          %v491 = vunpack.c.l.b16 %v475
          %v492 = vunpack.c.l.b16 %v476
          %v493 = vunpack.c.l.b16 %v477
          %v494 = vunpack.c.l.b16 %v478
          %v495 = vunpack.c.l.b16 %v479
          %v496 = vunpack.c.l.b16 %v480
          %v497 = vunpack.c.l.b16 %v481
          %v498 = vpack.c.b16 %v491, %v490
          %v499 = vpack.c.b16 %v493, %v492
          %v500 = vpack.c.b16 %v495, %v494
          %v501 = vpack.c.b16 %v497, %v496
          %vm506 = vcmask 261120
          %507 = vst.msk [vmem:[#allocation2] sm:$0xff] %vm506, %v498
          %508 = vst.msk [vmem:[#allocation2 + $0x8] sm:$0xff] %vm506, %v499
          %509 = vst.msk [vmem:[#allocation2 + $0x10] sm:$0xff] %vm506, %v500
          %510 = vst.msk [vmem:[#allocation2 + $0x18] sm:$0xff] %vm506, %v501
        $region56: #{tpu_custom_call.1} parent=35 // pred_fallthru
          _
        %v511 = vld [vmem:[#allocation2] sm:$0xff]
        %v512 = vld [vmem:[#allocation2 + $0x8] sm:$0xff]
        %v513 = vld [vmem:[#allocation2 + $0x10] sm:$0xff]
        %v514 = vld [vmem:[#allocation2 + $0x18] sm:$0xff]
        %v515 = vld [vmem:[#allocation8] sm:$0xf]
        %v516 = vld [vmem:[#allocation8 + $0x4] sm:$0xf]
        %v517 = vld [vmem:[#allocation8 + $0x8] sm:$0xf]
        %v518 = vld [vmem:[#allocation8 + $0xc] sm:$0xf]
        %v519 = vld [vmem:[#allocation9] sm:$0x1]
        %v521 = vlaneseq
        %v522 = vshrl.u32 %v521, 7
        %v523 = vsub.s32 0, %v522
        %v524 = vrot.slane %v519, %v523
        %v530 = vunpack.c.l.b16 %v515
        %v531 = vunpack.c.l.b16 %v516
        %v532 = vunpack.c.l.b16 %v517
        %v533 = vunpack.c.l.b16 %v518
        %v534 = vpack.c.b16 %v531, %v530
        %v535 = vpack.c.b16 %v533, %v532
        %vm538 = vcmask 261120
        %v540 = vsel %vm538, %v511, 0
        %v543 = vsel %vm538, %v512, 0
        %v546 = vsel %vm538, %v513, 0
        %v549 = vsel %vm538, %v514, 0
        %551 = vmatprep.subr.bf16.mxu0 0
        %552 = vmatpush1.bf16.msra.mxu0 %v534
        %553 = vmatprep.subr.bf16.mxu0 0
        %554 = vmatpush1.bf16.msra.mxu0 %v535
        %555 = vmatprep.subr.bf16.mxu0 0
        %556 = vmatpush1.bf16.msra.mxu0 0
        %557 = vmatprep.subr.bf16.mxu0 0
        %558 = vmatpush1.bf16.msra.mxu0 0
        %559 = vmatprep.subr.bf16.mxu0 0
        %560 = vmatpush1.bf16.msra.mxu0 0
        %561 = vmatprep.subr.bf16.mxu0 0
        %562 = vmatpush1.bf16.msra.mxu0 0
        %563 = vmatprep.subr.bf16.mxu0 0
        %564 = vmatpush1.bf16.msra.mxu0 0
        %565 = vmatprep.subr.bf16.mxu0 0
        %566 = vmatpush1.bf16.msra.mxu0 0
        %567 = vmatprep.subr.bf16.mxu0 0
        %568 = vmatpush1.bf16.msra.mxu0 0
        %569 = vmatprep.subr.bf16.mxu0 0
        %570 = vmatpush1.bf16.msra.mxu0 0
        %571 = vmatprep.subr.bf16.mxu0 0
        %572 = vmatpush1.bf16.msra.mxu0 0
        %573 = vmatprep.subr.bf16.mxu0 0
        %574 = vmatpush1.bf16.msra.mxu0 0
        %575 = vmatprep.subr.bf16.mxu0 0
        %576 = vmatpush1.bf16.msra.mxu0 0
        %577 = vmatprep.subr.bf16.mxu0 0
        %578 = vmatpush1.bf16.msra.mxu0 0
        %579 = vmatprep.subr.bf16.mxu0 0
        %580 = vmatpush1.bf16.msra.mxu0 0
        %581 = vmatprep.subr.bf16.mxu0 0
        %582 = vmatpush1.bf16.msra.mxu0 0
        %583 = vmatprep.mubr.bf16.mxu0 0
        %584 = vmatmul.mubr.bf16.gmra.mrb[0].mxu0 %v540
        %v585 = vpop.f32.mrb[0].mxu0
        %v586 = vadd.f32 %v524, %v585
        %v587 = vpop.f32.mrb[0].mxu0
        %v588 = vpop.f32.mrb[0].mxu0
        %v589 = vadd.f32 %v524, %v588
        %v590 = vpop.f32.mrb[0].mxu0
        %591 = vmatprep.mubr.bf16.mxu0 0
        %592 = vmatmul.mubr.bf16.gmra.mrb[0].mxu0 %v543
        %v593 = vpop.f32.mrb[0].mxu0
        %v594 = vadd.f32 %v524, %v593
        %v595 = vpop.f32.mrb[0].mxu0
        %v596 = vpop.f32.mrb[0].mxu0
        %v597 = vadd.f32 %v524, %v596
        %v598 = vpop.f32.mrb[0].mxu0
        %599 = vmatprep.mubr.bf16.mxu0 0
        %600 = vmatmul.mubr.bf16.gmra.mrb[0].mxu0 %v546
        %v601 = vpop.f32.mrb[0].mxu0
        %v602 = vadd.f32 %v524, %v601
        %v603 = vpop.f32.mrb[0].mxu0
        %v604 = vpop.f32.mrb[0].mxu0
        %v605 = vadd.f32 %v524, %v604
        %v606 = vpop.f32.mrb[0].mxu0
        %607 = vmatprep.mubr.bf16.mxu0 0
        %608 = vmatmul.mubr.bf16.gmra.mrb[0].mxu0 %v549
        %v609 = vpop.f32.mrb[0].mxu0
        %v610 = vadd.f32 %v524, %v609
        %v611 = vpop.f32.mrb[0].mxu0
        %v612 = vpop.f32.mrb[0].mxu0
        %v613 = vadd.f32 %v524, %v612
        %v614 = vpop.f32.mrb[0].mxu0
        %615 = vdwg.mxu0
        %v616 = vpack.c.bf16 %v586, %v586
        %v617 = vpack.c.bf16 %v589, %v589
        %v618 = vpack.c.bf16 %v594, %v594
        %v619 = vpack.c.bf16 %v597, %v597
        %v620 = vpack.c.bf16 %v602, %v602
        %v621 = vpack.c.bf16 %v605, %v605
        %v622 = vpack.c.bf16 %v610, %v610
        %v623 = vpack.c.bf16 %v613, %v613
        %624 = vst [vmem:[%s328] sm:$0xf] %v616
        %625 = vst [vmem:[%s328 + $0x4] sm:$0xf] %v617
        %626 = vst [vmem:[%s328 + $0x8] sm:$0xf] %v618
        %627 = vst [vmem:[%s328 + $0xc] sm:$0xf] %v619
        %628 = vst [vmem:[%s328 + $0x10] sm:$0xf] %v620
        %629 = vst [vmem:[%s328 + $0x14] sm:$0xf] %v621
        %630 = vst [vmem:[%s328 + $0x18] sm:$0xf] %v622
        %631 = vst [vmem:[%s328 + $0x1c] sm:$0xf] %v623
        %s632 = sand.u32 %s173, 1
        %s633 = scalar_lea.sflag [#allocation5], %s632
        %s634 = sand.u32 %s173, 1
        %s635 = smul.addr %s634, 32
        %s636 = scalar_lea.vmem [#allocation11], %s635
        // Predicated region
        $region57: #{tpu_custom_call.1} parent=35 // pred_check
          %p637 = pneg %p183
        $region58: #{tpu_custom_call.1} parent=35 // pred_check_branch
          %639 = sbr.rel (%p637) target = $region60
        $region59: #{tpu_custom_call.1} parent=35 // pred_region
          %s640 = smul.u32 8, %s32
          %s642 = ssub.s32 512, 512
          %643 = vsyncadd %s633, %s642
          %s644 = sadd.s32 %s34, %s33
          %s645 = sadd.s32 %s644, %s640
          %s646 = smul.addr %s31, 8
          %s647 = sadd.s32 %s645, %s646
          %s648 = smul.addr %s647, 64
          %s649 = scalar_lea.hbm %s4, %s648
          %s650 = sshll.u32 %s636, 4
          %s651 = int_to_ptr.vmem [resolvable:$true] %s650
          %656 = dma.vmem_to_hbm [thread:$0]  %s651, 512, %s649, %s633, 64, 64, 4
        $region60: #{tpu_custom_call.1} parent=35 // pred_fallthru
          _
      $region36: #{tpu_custom_call.1} parent=5 // pred_fallthru
        _
      %p657 = scmp.le.s32.totalorder 2, %s20
      // Predicated region
      $region61: #{tpu_custom_call.1} parent=5 // pred_check
        %p658 = pneg %p657
      $region62: #{tpu_custom_call.1} parent=5 // pred_check_branch
        %660 = sbr.rel (%p658) target = $region64
      $region63: #{tpu_custom_call.1} parent=5 // pred_region
        %s661 = ssub.s32 %s20, 2
        // Predicated region
        $region65: #{tpu_custom_call.1} parent=63 // pred_check
          %p662 = pneg %p189
        $region66: #{tpu_custom_call.1} parent=63 // pred_check_branch
          %664 = sbr.rel (%p662) target = $region68
        $region67: #{tpu_custom_call.1} parent=63 // pred_region
          %s665 = sand.u32 %s174, 1
          %s666 = scalar_lea.sflag [#allocation5], %s665
          %s667 = sand.u32 %s174, 1
          %s668 = smul.addr %s667, 32
          %s669 = scalar_lea.vmem [#allocation11], %s668
          %670 = dma.done %s666, 512
        $region68: #{tpu_custom_call.1} parent=63 // pred_fallthru
          _
      $region64: #{tpu_custom_call.1} parent=5 // pred_fallthru
        _
    $region6: #{tpu_custom_call.1} parent=1 // loop_footer
      %s24 = sadd.s32 1, %s20
    $region7: #{tpu_custom_call.1} parent=1 // loop_footer_branch
      %19 = sbr.rel target = $region3
    $region8: #{tpu_custom_call.1} parent=1 // loop_exit
      _
    %671 = vsyncpa [#allocation4], 1
    %s672 = scalar_lea.sflag [#allocation4], 1
    %673 = vsyncpa %s672, 1
    %674 = vsyncpa [#allocation7], 1
    %s675 = scalar_lea.sflag [#allocation7], 1
    %676 = vsyncpa %s675, 1
    %677 = vsyncpa [#allocation10], 1
    %678 = vsyncpa [#allocation5], 1
    %s679 = scalar_lea.sflag [#allocation5], 1
    %680 = vsyncpa %s679, 1

</llo_original>
